<compile_context>
chip_gen: v7x
topology: tpu7x:2x2x1
jax: 0.10.0
libtpu: 0.0.40
codegen_flags: <defaults>
</compile_context>

<pallas_src>
import functools

import jax
import jax.numpy as jnp
from jax.experimental import pallas as pl
from jax.experimental.pallas import tpu as pltpu


LANE = 128          # vreg lane width
ALIGN_ROWS = 16     # kernel prefix alignment in sublane rows (works for f32 & bf16 tiling)


def _sq_diff_sum_kernel(ze_ref, zq_ref, out_ref, acc_ref, *,
                        tile_rows, steps_per_core, last_tile,
                        rows_in_last, partial_last, has_duplicate):
    """Per-core accumulation of sum((z_e - z_q)^2) into a single (8, 128) vreg.

    Steady state is 2 vector loads + a handful of VPU ops per vreg (sub, mul,
    add into the vreg-resident accumulator); the one cross-lane reduction and
    the scalar SMEM store happen once per core at the last reduction step.
    """
    c = pl.program_id(0)          # per-TensorCore partial (size 1 on v5e/v6e)
    i = pl.program_id(1)          # sequential reduction axis
    blk = c * steps_per_core + i  # un-clamped global tile index

    @pl.when(i == 0)
    def _init():
        acc_ref[...] = jnp.zeros_like(acc_ref)

    def accumulate(mask_rows):
        d = ze_ref[...].astype(jnp.float32) - zq_ref[...].astype(jnp.float32)
        sq = d * d
        if mask_rows is not None:
            # Select AFTER squaring: discards any garbage (NaN/Inf) rows read
            # past the real extent of the partial boundary tile.
            row_idx = jax.lax.broadcasted_iota(jnp.int32, (tile_rows, LANE), 0)
            sq = jnp.where(row_idx < mask_rows, sq, 0.0)
        # (tile_rows, 128) -> (tile_rows//8, 8, 128): pure vreg relabeling;
        # sum over axis 0 is elementwise vreg adds (VPU), no XLU traffic.
        acc_ref[...] += sq.reshape(tile_rows // 8, 8, LANE).sum(axis=0)

    if partial_last or has_duplicate:
        full_cutoff = last_tile if partial_last else last_tile + 1

        @pl.when(blk < full_cutoff)
        def _full_tiles():
            accumulate(None)

        if partial_last:
            @pl.when(blk == last_tile)
            def _boundary_tile():
                accumulate(rows_in_last)
        # blk > last_tile (clamped duplicate tile on the 2nd core) contributes
        # nothing: skipped entirely.
    else:
        accumulate(None)

    @pl.when(i == pl.num_programs(1) - 1)
    def _finish():
        out_ref[0, 0] = jnp.sum(acc_ref[...])


def _device_kind():
    try:
        return jax.devices()[0].device_kind.lower()
    except Exception:
        return ""


def _sq_diff_sum(e2, q2):
    """sum((e2 - q2)^2) over a (rows, 128) slab, rows a multiple of 16."""
    rows = e2.shape[0]
    itemsize = jnp.dtype(e2.dtype).itemsize

    kind = _device_kind()
    is_v7 = "v7" in kind
    is_v5 = "v5" in kind

    # v5-class chips: smaller default scoped VMEM + slower HBM -> 4096 rows is
    # already past the amortization knee.  v6e/v7x: 8192 rows (16 MiB of f32
    # double-buffered inputs) stays well inside the scoped-VMEM budget.
    tile_target = 4096 if is_v5 else 8192
    tile_rows = min(tile_target, rows)          # block == full dim when small

    num_tiles = pl.cdiv(rows, tile_rows)
    n_parallel = 2 if (is_v7 and num_tiles >= 2) else 1
    steps_per_core = pl.cdiv(num_tiles, n_parallel)

    last_tile = num_tiles - 1
    rows_in_last = rows - last_tile * tile_rows
    partial_last = (rows % tile_rows) != 0
    has_duplicate = (n_parallel * steps_per_core) > num_tiles

    def in_index_map(c, i):
        blk = c * steps_per_core + i
        # Clamp the (rare) out-of-range duplicate tile on the second core; the
        # kernel skips its contribution entirely.
        return (jnp.minimum(blk, last_tile), 0)

    kernel = functools.partial(
        _sq_diff_sum_kernel,
        tile_rows=tile_rows,
        steps_per_core=steps_per_core,
        last_tile=last_tile,
        rows_in_last=rows_in_last,
        partial_last=partial_last,
        has_duplicate=has_duplicate,
    )

    if n_parallel == 2:
        dim_sem = (pltpu.CORE_PARALLEL, pltpu.ARBITRARY)   # explicit 2-TC split (v7x)
    else:
        dim_sem = ("arbitrary", "arbitrary")               # size-1 leading axis

    # Explicit VMEM budget: 2 inputs x 2 pipeline buffers x tile + generous
    # slack, capped below v7x's physical 64 MiB / default 32 MiB scoped limit.
    dbl_buf_bytes = 2 * 2 * tile_rows * LANE * itemsize
    vmem_limit = int(min(dbl_buf_bytes + (8 << 20), 30 << 20))

    n_elems = rows * LANE
    # TODO(synk): if xprof still shows exposed DMA at tile boundaries, sweep
    # pipeline_mode=pl.Buffered(3) on the two input BlockSpecs (VMEM permitting).
    partials = pl.pallas_call(
        kernel,
        out_shape=jax.ShapeDtypeStruct((n_parallel, 1), jnp.float32),
        grid_spec=pltpu.PrefetchScalarGridSpec(
            num_scalar_prefetch=0,
            grid=(n_parallel, steps_per_core),
            in_specs=[
                pl.BlockSpec((tile_rows, LANE), in_index_map),
                pl.BlockSpec((tile_rows, LANE), in_index_map),
            ],
            out_specs=pl.BlockSpec(
                (1, 1), lambda c, i: (c, 0), memory_space=pltpu.SMEM),
            scratch_shapes=[pltpu.VMEM((8, LANE), jnp.float32)],
        ),
        compiler_params=pltpu.CompilerParams(
            dimension_semantics=dim_sem,
            vmem_limit_bytes=vmem_limit),
        cost_estimate=pl.CostEstimate(
            flops=3 * n_elems,
            transcendentals=0,
            bytes_accessed=2 * n_elems * itemsize + 4 * n_parallel),
    )(e2, q2)

    return jnp.sum(partials)


def vq_loss(z_e, z_q, commitment_cost):
    """Pallas implementation of VQLoss.forward(z_e, z_q) (forward value)."""
    assert z_e.shape == z_q.shape, "z_e and z_q must have the same shape"
    n = z_e.size

    flat_e = z_e.reshape(-1)
    flat_q = z_q.reshape(-1)

    # Kernel handles the (ALIGN_ROWS * LANE)-aligned prefix (no jnp.pad copies);
    # the <2048-element ragged tail is summed in plain JAX.
    block_elems = ALIGN_ROWS * LANE
    aligned = (n // block_elems) * block_elems

    if aligned < n:
        te = flat_e[aligned:].astype(jnp.float32)
        tq = flat_q[aligned:].astype(jnp.float32)
        tail_sum = jnp.sum((te - tq) ** 2)
    else:
        tail_sum = jnp.float32(0.0)

    if aligned == 0:
        # Degenerate tiny input: nothing for the kernel to do.
        sq_sum = tail_sum
    else:
        rows = aligned // LANE
        if aligned == n:
            e2 = flat_e.reshape(rows, LANE)       # pure bitcast, no copy
            q2 = flat_q.reshape(rows, LANE)
        else:
            e2 = flat_e[:aligned].reshape(rows, LANE)
            q2 = flat_q[:aligned].reshape(rows, LANE)
        sq_sum = _sq_diff_sum(e2, q2) + tail_sum

    mse = sq_sum / jnp.float32(n)
    # TODO(synk): forward value only; training would need a custom_vjp to
    # reproduce PyTorch's detach() gradient split ((1+c)*mse has different grads).
    return mse + jnp.float32(commitment_cost) * mse


if __name__ == "__main__":
    key = jax.random.PRNGKey(0)
    k1, k2, k3, k4 = jax.random.split(key, 4)
    commitment_cost = 0.25

    # Small VQ-VAE-like latents, NCHW: batch=2, channels=4, spatial=16x16
    z_e = jax.random.normal(k1, (2, 4, 16, 16), dtype=jnp.float32)
    z_q = jax.random.normal(k2, (2, 4, 16, 16), dtype=jnp.float32)
    loss = jax.block_until_ready(vq_loss(z_e, z_q, commitment_cost))
    mse_ref = jnp.mean((z_e - z_q) ** 2)
    ref = mse_ref + commitment_cost * mse_ref
    assert jnp.allclose(loss, ref, rtol=1e-5, atol=1e-6), (loss, ref)

    # Ragged shape: exercises kernel prefix + plain-JAX tail path.
    z_e2 = jax.random.normal(k3, (2, 3, 33, 33), dtype=jnp.float32)
    z_q2 = jax.random.normal(k4, (2, 3, 33, 33), dtype=jnp.float32)
    loss2 = jax.block_until_ready(vq_loss(z_e2, z_q2, commitment_cost))
    mse_ref2 = jnp.mean((z_e2 - z_q2) ** 2)
    ref2 = mse_ref2 + commitment_cost * mse_ref2
    assert jnp.allclose(loss2, ref2, rtol=1e-5, atol=1e-6), (loss2, ref2)

    print("KERNEL_OK")
</pallas_src>

<mosaic_0001>
module attributes {stable_mosaic.version = 11 : i64} {
  func.func @_sq_diff_sum_kernel(%arg0: i32, %arg1: i32, %arg2: memref<16x128xf32, #tpu.memory_space<vmem>>, %arg3: memref<16x128xf32, #tpu.memory_space<vmem>>, %arg4: memref<1x1xf32, #tpu.memory_space<smem>>, %arg5: memref<8x128xf32, #tpu.memory_space<vmem>>) attributes {dimension_semantics = [#tpu.dimension_semantics<arbitrary>, #tpu.dimension_semantics<arbitrary>], iteration_bounds = array<i64: 1, 1>, scalar_prefetch = 0 : i64, scratch_operands = 1 : i64, tpu.core_type = #tpu.core_type<tc>, window_params = [{transform_indices = @transform_0, window_bounds = array<i64: 16, 128>}, {transform_indices = @transform_1, window_bounds = array<i64: 16, 128>}, {transform_indices = @transform_2, window_bounds = array<i64: 1, 1>}]} {
    %c0_i32 = arith.constant 0 : i32
    %0 = arith.cmpi eq, %arg1, %c0_i32 : i32
    %1 = arith.extui %0 : i1 to i32
    %c0_i32_0 = arith.constant 0 : i32
    %2 = arith.cmpi ne, %1, %c0_i32_0 : i32
    scf.if %2 {
      %cst_10 = arith.constant 0.000000e+00 : f32
      %15 = vector.broadcast %cst_10 : f32 to vector<8x128xf32>
      %c0_11 = arith.constant 0 : index
      %c0_12 = arith.constant 0 : index
      %16 = vector.load %arg5[%c0_11, %c0_12] : memref<8x128xf32, #tpu.memory_space<vmem>>, vector<8x128xf32>
      tpu.vector_store %arg5[%c0_11, %c0_12], %15 {strides = array<i32>} : memref<8x128xf32, #tpu.memory_space<vmem>>, vector<8x128xf32>,
    } else {
    }
    %c0 = arith.constant 0 : index
    %c0_1 = arith.constant 0 : index
    %3 = vector.load %arg2[%c0, %c0_1] : memref<16x128xf32, #tpu.memory_space<vmem>>, vector<16x128xf32>
    %c0_2 = arith.constant 0 : index
    %c0_3 = arith.constant 0 : index
    %4 = vector.load %arg3[%c0_2, %c0_3] : memref<16x128xf32, #tpu.memory_space<vmem>>, vector<16x128xf32>
    %5 = arith.subf %3, %4 : vector<16x128xf32>
    %6 = arith.mulf %5, %5 : vector<16x128xf32>
    %c0_4 = arith.constant 0 : index
    %c0_5 = arith.constant 0 : index
    %7 = vector.load %arg5[%c0_4, %c0_5] : memref<8x128xf32, #tpu.memory_space<vmem>>, vector<8x128xf32>
    %8 = vector.shape_cast %6 : vector<16x128xf32> to vector<2x8x128xf32>
    %cst = arith.constant dense<0.000000e+00> : vector<8x128xf32>
    %9 = vector.multi_reduction <add>, %8, %cst [0] : vector<2x8x128xf32> to vector<8x128xf32>
    %10 = arith.addf %7, %9 : vector<8x128xf32>
    %c0_6 = arith.constant 0 : index
    %c0_7 = arith.constant 0 : index
    %11 = vector.load %arg5[%c0_6, %c0_7] : memref<8x128xf32, #tpu.memory_space<vmem>>, vector<8x128xf32>
    tpu.vector_store %arg5[%c0_6, %c0_7], %10 {strides = array<i32>} : memref<8x128xf32, #tpu.memory_space<vmem>>, vector<8x128xf32>,
    %c0_i32_8 = arith.constant 0 : i32
    %12 = arith.cmpi eq, %arg1, %c0_i32_8 : i32
    %13 = arith.extui %12 : i1 to i32
    %c0_i32_9 = arith.constant 0 : i32
    %14 = arith.cmpi ne, %13, %c0_i32_9 : i32
    scf.if %14 {
      %c0_10 = arith.constant 0 : index
      %c0_11 = arith.constant 0 : index
      %15 = vector.load %arg5[%c0_10, %c0_11] : memref<8x128xf32, #tpu.memory_space<vmem>>, vector<8x128xf32>
      %16 = vector.shape_cast %15 : vector<8x128xf32> to vector<1x8x128xf32>
      %cst_12 = arith.constant dense<0.000000e+00> : vector<1xf32>
      %17 = vector.multi_reduction <add>, %16, %cst_12 [1, 2] : vector<1x8x128xf32> to vector<1xf32>
      %18 = vector.shape_cast %17 : vector<1xf32> to vector<1x1x1xf32>
      %19 = vector.extract %18[0, 0, 0] : f32 from vector<1x1x1xf32>
      %c0_13 = arith.constant 0 : index
      %c0_14 = arith.constant 0 : index
      %20 = memref.load %arg4[%c0_13, %c0_14] : memref<1x1xf32, #tpu.memory_space<smem>>
      memref.store %19, %arg4[%c0_13, %c0_14] : memref<1x1xf32, #tpu.memory_space<smem>>
    } else {
    }
    return
  }
  func.func @transform_0(%arg0: i32, %arg1: i32) -> (i32, i32) {
    %c1_i32 = arith.constant 1 : i32
    %0 = arith.muli %arg0, %c1_i32 : i32
    %1 = arith.addi %0, %arg1 : i32
    %c0_i32 = arith.constant 0 : i32
    %2 = arith.minsi %1, %c0_i32 : i32
    %c0_i32_0 = arith.constant 0 : i32
    %c0_i32_1 = arith.constant 0 : i32
    return %2, %c0_i32_0 : i32, i32
  }
  func.func @transform_1(%arg0: i32, %arg1: i32) -> (i32, i32) {
    %c1_i32 = arith.constant 1 : i32
    %0 = arith.muli %arg0, %c1_i32 : i32
    %1 = arith.addi %0, %arg1 : i32
    %c0_i32 = arith.constant 0 : i32
    %2 = arith.minsi %1, %c0_i32 : i32
    %c0_i32_0 = arith.constant 0 : i32
    %c0_i32_1 = arith.constant 0 : i32
    return %2, %c0_i32_0 : i32, i32
  }
  func.func @transform_2(%arg0: i32, %arg1: i32) -> (i32, i32) {
    %c0_i32 = arith.constant 0 : i32
    %c0_i32_0 = arith.constant 0 : i32
    return %arg0, %c0_i32 : i32, i32
  }
}

</mosaic_0001>

<llo_original>
// kernel: tpu_custom_call.1
$region0: #{tpu_custom_call.1}
  #allocation0 [shape = 'u32[]', space=smem, size = 0x4, offset = 0x4, fixed_abs, tag = 'smem constant byte address 0x4 - core index']
  #allocation1 [shape = 'u32[144,128]{1,0:T(1,128)}', space=vmem, size = 0x12000, scoped, tag = 'internal scratch']
  #allocation2 [shape = 'f32[8,128]{1,0:T(8,128)}', space=vmem, size = 0x1000, scoped, tag = 'scratch operand']
  %s0 = inlined_call_operand.hbm [shape: f32[16,128], index: 0, kind: input, shape index: {}]
  %s1 = inlined_call_operand.hbm [shape: f32[16,128], index: 1, kind: input, shape index: {}]
  %s2 = inlined_call_operand.hbm [shape: f32[1,1], index: 2, kind: output, shape index: {}]
  %s3 = sld [smem:[#allocation0]]
  $region34: #{tpu_custom_call.1} parent=0
    _
  %s5 = ssub.s32 1, %s3
  %s6 = scalar_select 0, %s5, %s3
  $region1: #{tpu_custom_call.1} parent=0
    #allocation3 [shape = 'u8[8192]{0}', space=vmem, size = 0x2000, scoped, tag = 'input window, operand 0, single buffered']
    #allocation4 [shape = 's32[1]{0}', space=sflag, size = 0x4, scoped, tag = 'scoped memory for tpu_custom_call.1']
    #allocation5 [shape = 's32[1]{0}', space=sflag, size = 0x4, scoped, tag = 'scoped memory for tpu_custom_call.1']
    #allocation6 [shape = 'u8[8192]{0}', space=vmem, size = 0x2000, scoped, tag = 'input window, operand 1, single buffered']
    #allocation7 [shape = 's32[1]{0}', space=sflag, size = 0x4, scoped, tag = 'scoped memory for tpu_custom_call.1']
    #allocation8 [shape = 'u8[512]{0}', space=smem, size = 0x200, scoped, tag = 'output window, operand 0, single buffered']
    %7 = vsyncpa [#allocation4], 0
    %8 = vsyncpa [#allocation7], 0
    %9 = vsyncpa [#allocation5], 0
    // Predicated region
    $region2: #{tpu_custom_call.1} parent=1 // pred_check
      _
    $region3: #{tpu_custom_call.1} parent=1 // pred_check_branch
      %11 = sbr.rel (0) target = $region5
    $region4: #{tpu_custom_call.1} parent=1 // pred_region
      %s12 = sadd.s32 0, 0
      %p13 = scmp.lt.s32.totalorder %s12, 0
      %s14 = scalar_select %p13, %s12, 0
      %s15 = smul.u32 2, %s14
      %s17 = ssub.s32 256, 256
      %18 = vsyncadd [#allocation4], %s17
      %s19 = smul.addr %s15, 128
      %s20 = scalar_lea.hbm %s0, %s19
      %s21 = sshll.u32 [#allocation3], 4
      %s22 = int_to_ptr.vmem [resolvable:$true] %s21
      %27 = dma.hbm_to_vmem [thread:$0]  %s20, 256, %s22, [#allocation4], 128, 128, 8
    $region5: #{tpu_custom_call.1} parent=1 // pred_fallthru
      _
    // Predicated region
    $region6: #{tpu_custom_call.1} parent=1 // pred_check
      _
    $region7: #{tpu_custom_call.1} parent=1 // pred_check_branch
      %29 = sbr.rel (0) target = $region9
    $region8: #{tpu_custom_call.1} parent=1 // pred_region
      %s30 = sadd.s32 0, 0
      %p31 = scmp.lt.s32.totalorder %s30, 0
      %s32 = scalar_select %p31, %s30, 0
      %s33 = smul.u32 2, %s32
      %s35 = ssub.s32 256, 256
      %36 = vsyncadd [#allocation7], %s35
      %s37 = smul.addr %s33, 128
      %s38 = scalar_lea.hbm %s1, %s37
      %s39 = sshll.u32 [#allocation6], 4
      %s40 = int_to_ptr.vmem [resolvable:$true] %s39
      %45 = dma.hbm_to_vmem [thread:$0]  %s38, 256, %s40, [#allocation7], 128, 128, 8
    $region9: #{tpu_custom_call.1} parent=1 // pred_fallthru
      _
    // Predicated region
    $region10: #{tpu_custom_call.1} parent=1 // pred_check
      _
    $region11: #{tpu_custom_call.1} parent=1 // pred_check_branch
      %47 = sbr.rel (0) target = $region13
    $region12: #{tpu_custom_call.1} parent=1 // pred_region
      %48 = dma.done [#allocation4], 256
    $region13: #{tpu_custom_call.1} parent=1 // pred_fallthru
      _
    // Predicated region
    $region14: #{tpu_custom_call.1} parent=1 // pred_check
      _
    $region15: #{tpu_custom_call.1} parent=1 // pred_check_branch
      %50 = sbr.rel (0) target = $region17
    $region16: #{tpu_custom_call.1} parent=1 // pred_region
      %51 = dma.done [#allocation7], 256
    $region17: #{tpu_custom_call.1} parent=1 // pred_fallthru
      _
    %s52 = sadd.s32 0, 0
    %p53 = scmp.lt.s32.totalorder %s52, 0
    %s54 = scalar_select %p53, %s52, 0
    %s55 = smul.u32 2, %s54
    %s56 = sadd.s32 0, 0
    %p57 = scmp.lt.s32.totalorder %s56, 0
    %s58 = scalar_select %p57, %s56, 0
    %s59 = smul.u32 2, %s58
    %p60 = scmp.eq.s32.totalorder 0, 0
    // Predicated region
    $region18: #{tpu_custom_call.1} parent=1 // pred_check
      %p61 = pneg %p60
    $region19: #{tpu_custom_call.1} parent=1 // pred_check_branch
      %63 = sbr.rel (%p61) target = $region21
    $region20: #{tpu_custom_call.1} parent=1 // pred_region
      %64 = vst [vmem:[#allocation2] sm:$0xff] 0.0
    $region21: #{tpu_custom_call.1} parent=1 // pred_fallthru
      _
    %v65 = vld [vmem:[#allocation3] sm:$0xff]
    %v66 = vld [vmem:[#allocation3 + $0x8] sm:$0xff]
    %v67 = vld [vmem:[#allocation6] sm:$0xff]
    %v68 = vld [vmem:[#allocation6 + $0x8] sm:$0xff]
    %v69 = vsub.f32 %v65, %v67
    %v70 = vsub.f32 %v66, %v68
    %v71 = vmul.f32 %v69, %v69
    %v72 = vmul.f32 %v70, %v70
    %v73 = vld [vmem:[#allocation2] sm:$0xff]
    %v74 = vadd.f32 %v71, %v72
    %v75 = vadd.f32 %v73, %v74
    %76 = vst [vmem:[#allocation2] sm:$0xff] %v75
    // Predicated region
    $region22: #{tpu_custom_call.1} parent=1 // pred_check
      %p77 = pneg %p60
    $region23: #{tpu_custom_call.1} parent=1 // pred_check_branch
      %79 = sbr.rel (%p77) target = $region25
    $region24: #{tpu_custom_call.1} parent=1 // pred_region
      %v80 = vld [vmem:[#allocation2] sm:$0xff]
      %81 = vadd.xlane.f32.xlu0 %v80
      %v82 = vpop.xlane.xlu0 %81
      %v83 = vrot.slane %v82, 4
      %v84 = vadd.f32 %v82, %v83
      %v85 = vrot.slane %v84, 2
      %v86 = vadd.f32 %v84, %v85
      %v87 = vrot.slane %v86, 1
      %v88 = vadd.f32 %v86, %v87
      %s89 = vtos %v88
      %s90 = scalar_lea.smem [#allocation8], 0
      %91 = sst [smem:[%s90]] %s89
    $region25: #{tpu_custom_call.1} parent=1 // pred_fallthru
      _
    // Predicated region
    $region26: #{tpu_custom_call.1} parent=1 // pred_check
      _
    $region27: #{tpu_custom_call.1} parent=1 // pred_check_branch
      %93 = sbr.rel (0) target = $region29
    $region28: #{tpu_custom_call.1} parent=1 // pred_region
      %s95 = ssub.s32 16, 16
      %96 = vsyncadd [#allocation5], %s95
      %99 = dma.smem_to_hbm [#allocation8], 16, %s2, [#allocation5]
    $region29: #{tpu_custom_call.1} parent=1 // pred_fallthru
      _
    // Predicated region
    $region30: #{tpu_custom_call.1} parent=1 // pred_check
      _
    $region31: #{tpu_custom_call.1} parent=1 // pred_check_branch
      %101 = sbr.rel (0) target = $region33
    $region32: #{tpu_custom_call.1} parent=1 // pred_region
      %102 = dma.done [#allocation5], 16
    $region33: #{tpu_custom_call.1} parent=1 // pred_fallthru
      _
    %103 = sfence
    %104 = vsyncpa [#allocation4], 1
    %105 = vsyncpa [#allocation7], 1
    %106 = vsyncpa [#allocation5], 1

</llo_original>
